<compile_context>
chip_gen: v6e
topology: v6e:2x2x1
jax: 0.10.0
libtpu: 0.0.40
codegen_flags: <defaults>
</compile_context>

<pallas_src>
import functools

import jax
import jax.numpy as jnp
from jax.experimental import pallas as pl
from jax.experimental.pallas import tpu as pltpu

HID1 = 256          # first hidden width
HID2 = 64           # logical second hidden width
HID2_PAD = 128      # lane-padded second hidden width
TB_CAP = 2048       # batch-tile cap (review: 1024-2048)


def _round_up(x, m):
    return ((x + m - 1) // m) * m


# ---------------------------------------------------------------------------
# Kernel
# ---------------------------------------------------------------------------
def value_mlp_kernel(x_ref, w1_ref, b1_ref, w2_ref, b2_ref, w3_ref, b3_ref, o_ref):
    # x tile: [TB, F] f32 -> bf16 for the MXU (f32 accumulation below).
    x = x_ref[...].astype(jnp.bfloat16)

    # Layer 1: Linear(F -> 256) + ReLU.
    h1 = jnp.dot(x, w1_ref[...], preferred_element_type=jnp.float32) + b1_ref[...]
    h1 = jnp.maximum(h1, 0.0)

    # Dropout(0.5): identity in eval/inference mode.
    # TODO(synk): training-mode dropout (pltpu.prng_seed/prng_random_bits mask + 2x scale).

    # Layer 2: Linear(256 -> 128-padded-64) + ReLU.  Padded cols of w2/b2 are zero,
    # so h2[:, 64:] == 0 after ReLU.
    h1 = h1.astype(jnp.bfloat16)
    h2 = jnp.dot(h1, w2_ref[...], preferred_element_type=jnp.float32) + b2_ref[...]
    h2 = jnp.maximum(h2, 0.0)

    # Layer 3: Linear(64 -> 1) as a VPU multiply + lane reduction. w3_ref is [1, 128].
    o_ref[...] = jnp.sum(h2 * w3_ref[...], axis=-1, keepdims=True) + b3_ref[...]


# ---------------------------------------------------------------------------
# VMEM-aware batch-tile sizing
# ---------------------------------------------------------------------------
def _vmem_capacity_bytes():
    try:
        return int(pltpu.get_tpu_info().vmem_capacity_bytes)
    except Exception:
        return 64 << 20  # conservative (v7x per-TC physical VMEM)


def _weight_vmem_bytes(F):
    # Constant-index blocks are still double-buffered by the pipeline (2x).
    w = F * HID1 * 2 + HID1 * HID2_PAD * 2                 # bf16 weights
    # (1, N) biases / w3 row pad to 8 sublanes in VMEM.
    b = 8 * (HID1 + HID2_PAD + HID2_PAD + 128) * 4
    return 2 * (w + b)


def _per_row_vmem_bytes(F):
    x = 2 * F * 4                       # double-buffered f32 x tile
    out = 2 * 128 * 4                   # (tb, 1) out block lane-pads to 128, x2 buffers
    act = (HID1 + HID2_PAD) * 4 + HID1 * 2   # h1/h2 f32 spill + h1 bf16 recast
    return x + out + act


def _pick_tb(B, F):
    # Tile-sizing budget: a conservative slice of this generation's VMEM
    # (v7x 64 MiB -> 16 MiB, v5e/v6e 128 MiB -> 24 MiB), leaving room for
    # compiler scratch.  The actual scoped limit is passed explicitly below.
    budget = min(_vmem_capacity_bytes() // 4, 24 << 20)
    avail = budget - _weight_vmem_bytes(F)
    tb_vmem = max(8, avail // _per_row_vmem_bytes(F))
    tb = min(TB_CAP, tb_vmem, _round_up(B, 8))
    tb = max(8, (tb // 8) * 8)
    # v7x megacore: ensure the "parallel" batch axis spans >= 2 grid steps when the
    # batch allows, so both TensorCores get work (no-op on single-TC v5e/v6e).
    while _round_up(B, tb) // tb < 2 and tb > 8:
        tb = max(8, _round_up(tb // 2, 8))
    return int(tb)


# ---------------------------------------------------------------------------
# Wrapper
# ---------------------------------------------------------------------------
def diffusion_value_network(features, params, *, tb=None):
    """features: [B, F] float32 -> [B, 1] float32 (V(prompt) per row)."""
    w1, b1, w2, b2, w3, b3 = params
    B, F = features.shape
    assert w1.shape == (F, HID1)
    assert w2.shape == (HID1, HID2_PAD)
    assert w3.shape == (1, HID2_PAD)

    if tb is None:
        tb = _pick_tb(B, F)
    tb = max(8, (tb // 8) * 8)

    Bp = _round_up(B, tb)
    if Bp != B:
        features = jnp.pad(features, ((0, Bp - B), (0, 0)))

    grid = (Bp // tb,)

    # Weights/biases: full-array blocks with a constant index_map -> fetched once,
    # VMEM-resident across the whole batch grid.
    const = lambda a: pl.BlockSpec(a.shape, lambda i: (0,) * a.ndim)

    flops = 2 * Bp * (F * HID1 + HID1 * HID2_PAD + HID2_PAD)
    bytes_accessed = (
        Bp * F * 4                       # x
        + w1.size * 2 + w2.size * 2      # bf16 weights
        + (b1.size + b2.size + w3.size + b3.size) * 4
        + Bp * 4                         # output
    )

    # Explicit scoped-VMEM limit (review): derived from actual usage with generous
    # headroom, never relying on the per-generation default (16/32 MiB).
    vmem_needed = _weight_vmem_bytes(F) + tb * _per_row_vmem_bytes(F)
    vmem_limit = int(min(64 << 20, max(16 << 20, vmem_needed * 3 // 2 + (4 << 20))))

    out = pl.pallas_call(
        value_mlp_kernel,
        out_shape=jax.ShapeDtypeStruct((Bp, 1), jnp.float32),
        grid=grid,
        in_specs=[
            pl.BlockSpec((tb, F), lambda i: (i, 0)),   # x: tiled over batch
            const(w1), const(b1), const(w2), const(b2), const(w3), const(b3),
        ],
        out_specs=pl.BlockSpec((tb, 1), lambda i: (i, 0)),
        compiler_params=pltpu.CompilerParams(
            dimension_semantics=("parallel",),
            vmem_limit_bytes=vmem_limit,
        ),
        cost_estimate=pl.CostEstimate(
            flops=flops, transcendentals=0, bytes_accessed=bytes_accessed),
    )(features, w1, b1, w2, b2, w3, b3)

    return out[:B]


# ---------------------------------------------------------------------------
# Params / reference
# ---------------------------------------------------------------------------
def init_params(key, feature_dim):
    """Deterministic synthetic init matching the PyTorch layer shapes.

    PyTorch Linear(in, out) has weight [out, in]; we store [in, out].
    Layer-1/2 weights are bf16; the second hidden dim is zero-padded 64 -> 128;
    the final layer is stored as a [1, 128] f32 row for the VPU reduction.
    """
    k1, k2, k3, k4, k5, k6 = jax.random.split(key, 6)

    def lin(kw, kb, d_in, d_out):
        bound = 1.0 / jnp.sqrt(d_in)
        w = jax.random.uniform(kw, (d_in, d_out), jnp.float32, -bound, bound)
        b = jax.random.uniform(kb, (1, d_out), jnp.float32, -bound, bound)
        return w, b

    w1, b1 = lin(k1, k2, feature_dim, HID1)
    w2, b2 = lin(k3, k4, HID1, HID2)
    w3, b3 = lin(k5, k6, HID2, 1)

    w1 = w1.astype(jnp.bfloat16)
    w2 = jnp.pad(w2, ((0, 0), (0, HID2_PAD - HID2))).astype(jnp.bfloat16)
    b2 = jnp.pad(b2, ((0, 0), (0, HID2_PAD - HID2)))
    w3_row = jnp.pad(w3.T, ((0, 0), (0, HID2_PAD - HID2)))   # [1, 128] f32
    return (w1, b1, w2, b2, w3_row, b3)


def reference_forward(features, params):
    """Pure-JAX reference with the same dtype pipeline as the kernel."""
    w1, b1, w2, b2, w3_row, b3 = params
    x = features.astype(jnp.bfloat16)
    h1 = jnp.maximum(
        jnp.dot(x, w1, preferred_element_type=jnp.float32) + b1, 0.0)
    h2 = jnp.maximum(
        jnp.dot(h1.astype(jnp.bfloat16), w2, preferred_element_type=jnp.float32) + b2, 0.0)
    return jnp.sum(h2 * w3_row, axis=-1, keepdims=True) + b3


if __name__ == "__main__":
    key = jax.random.PRNGKey(0)
    k_feat, k_params = jax.random.split(key)

    batch, feature_dim = 64, 512  # module default feature_dim=512, small batch
    features = jax.random.normal(k_feat, (batch, feature_dim), jnp.float32)
    params = init_params(k_params, feature_dim)

    fwd = jax.jit(functools.partial(diffusion_value_network, params=params))
    out = jax.block_until_ready(fwd(features))

    ref = reference_forward(features, params)
    assert out.shape == (batch, 1)
    assert jnp.allclose(out, ref, atol=1e-2, rtol=1e-2), "mismatch vs reference"

    print("KERNEL_OK")
</pallas_src>

<mosaic_0001>
module attributes {stable_mosaic.version = 11 : i64} {
  func.func @value_mlp_kernel(%arg0: i32, %arg1: memref<32x512xf32, #tpu.memory_space<vmem>>, %arg2: memref<512x256xbf16, #tpu.memory_space<vmem>>, %arg3: memref<1x256xf32, #tpu.memory_space<vmem>>, %arg4: memref<256x128xbf16, #tpu.memory_space<vmem>>, %arg5: memref<1x128xf32, #tpu.memory_space<vmem>>, %arg6: memref<1x128xf32, #tpu.memory_space<vmem>>, %arg7: memref<1x1xf32, #tpu.memory_space<vmem>>, %arg8: memref<32x1xf32, #tpu.memory_space<vmem>>) attributes {dimension_semantics = [#tpu.dimension_semantics<parallel>], iteration_bounds = array<i64: 2>, scalar_prefetch = 0 : i64, scratch_operands = 0 : i64, tpu.core_type = #tpu.core_type<tc>, window_params = [{transform_indices = @transform_0, window_bounds = array<i64: 32, 512>}, {pipeline_mode = #tpu.pipeline_mode<synchronous>, transform_indices = @transform_1, window_bounds = array<i64: 512, 256>}, {pipeline_mode = #tpu.pipeline_mode<synchronous>, transform_indices = @transform_2, window_bounds = array<i64: 1, 256>}, {pipeline_mode = #tpu.pipeline_mode<synchronous>, transform_indices = @transform_3, window_bounds = array<i64: 256, 128>}, {pipeline_mode = #tpu.pipeline_mode<synchronous>, transform_indices = @transform_4, window_bounds = array<i64: 1, 128>}, {pipeline_mode = #tpu.pipeline_mode<synchronous>, transform_indices = @transform_5, window_bounds = array<i64: 1, 128>}, {pipeline_mode = #tpu.pipeline_mode<synchronous>, transform_indices = @transform_6, window_bounds = array<i64: 1, 1>}, {transform_indices = @transform_7, window_bounds = array<i64: 32, 1>}]} {
    %c0 = arith.constant 0 : index
    %c0_0 = arith.constant 0 : index
    %0 = vector.load %arg1[%c0, %c0_0] : memref<32x512xf32, #tpu.memory_space<vmem>>, vector<32x512xf32>
    %1 = arith.truncf %0 : vector<32x512xf32> to vector<32x512xbf16>
    %c0_1 = arith.constant 0 : index
    %c0_2 = arith.constant 0 : index
    %2 = vector.load %arg2[%c0_1, %c0_2] : memref<512x256xbf16, #tpu.memory_space<vmem>>, vector<512x256xbf16>
    %cst = arith.constant dense<0.000000e+00> : vector<32x256xf32>
    %3 = tpu.matmul %1, %2, %cst {dimension_numbers = #tpu.dot_dimension_numbers<[1], [0], [0], [1], [0, 0, 1, 1], [], []>} : vector<32x512xbf16>, vector<512x256xbf16>, vector<32x256xf32> -> vector<32x256xf32>
    %c0_3 = arith.constant 0 : index
    %c0_4 = arith.constant 0 : index
    %4 = vector.load %arg3[%c0_3, %c0_4] : memref<1x256xf32, #tpu.memory_space<vmem>>, vector<1x256xf32>
    %5 = vector.broadcast %4 : vector<1x256xf32> to vector<32x256xf32>
    %6 = arith.addf %3, %5 : vector<32x256xf32>
    %cst_5 = arith.constant 0.000000e+00 : f32
    %7 = vector.broadcast %cst_5 : f32 to vector<32x256xf32>
    %8 = arith.maximumf %6, %7 : vector<32x256xf32>
    %9 = arith.truncf %8 : vector<32x256xf32> to vector<32x256xbf16>
    %c0_6 = arith.constant 0 : index
    %c0_7 = arith.constant 0 : index
    %10 = vector.load %arg4[%c0_6, %c0_7] : memref<256x128xbf16, #tpu.memory_space<vmem>>, vector<256x128xbf16>
    %cst_8 = arith.constant dense<0.000000e+00> : vector<32x128xf32>
    %11 = tpu.matmul %9, %10, %cst_8 {dimension_numbers = #tpu.dot_dimension_numbers<[1], [0], [0], [1], [0, 0, 1, 1], [], []>} : vector<32x256xbf16>, vector<256x128xbf16>, vector<32x128xf32> -> vector<32x128xf32>
    %c0_9 = arith.constant 0 : index
    %c0_10 = arith.constant 0 : index
    %12 = vector.load %arg5[%c0_9, %c0_10] : memref<1x128xf32, #tpu.memory_space<vmem>>, vector<1x128xf32>
    %13 = vector.broadcast %12 : vector<1x128xf32> to vector<32x128xf32>
    %14 = arith.addf %11, %13 : vector<32x128xf32>
    %cst_11 = arith.constant 0.000000e+00 : f32
    %15 = vector.broadcast %cst_11 : f32 to vector<32x128xf32>
    %16 = arith.maximumf %14, %15 : vector<32x128xf32>
    %c0_12 = arith.constant 0 : index
    %c0_13 = arith.constant 0 : index
    %17 = vector.load %arg6[%c0_12, %c0_13] : memref<1x128xf32, #tpu.memory_space<vmem>>, vector<1x128xf32>
    %18 = vector.broadcast %17 : vector<1x128xf32> to vector<32x128xf32>
    %19 = arith.mulf %16, %18 : vector<32x128xf32>
    %cst_14 = arith.constant dense<0.000000e+00> : vector<32xf32>
    %20 = vector.multi_reduction <add>, %19, %cst_14 [1] : vector<32x128xf32> to vector<32xf32>
    %21 = vector.shape_cast %20 : vector<32xf32> to vector<32x1xf32>
    %c0_15 = arith.constant 0 : index
    %c0_16 = arith.constant 0 : index
    %22 = vector.load %arg7[%c0_15, %c0_16] : memref<1x1xf32, #tpu.memory_space<vmem>>, vector<1x1xf32>
    %23 = vector.broadcast %22 : vector<1x1xf32> to vector<32x1xf32>
    %24 = arith.addf %21, %23 : vector<32x1xf32>
    %c0_17 = arith.constant 0 : index
    %c0_18 = arith.constant 0 : index
    %25 = vector.load %arg8[%c0_17, %c0_18] : memref<32x1xf32, #tpu.memory_space<vmem>>, vector<32x1xf32>
    tpu.vector_store %arg8[%c0_17, %c0_18], %24 {strides = array<i32>} : memref<32x1xf32, #tpu.memory_space<vmem>>, vector<32x1xf32>,
    return
  }
  func.func @transform_0(%arg0: i32) -> (i32, i32) {
    %c0_i32 = arith.constant 0 : i32
    %c0_i32_0 = arith.constant 0 : i32
    return %arg0, %c0_i32 : i32, i32
  }
  func.func @transform_1(%arg0: i32) -> (i32, i32) {
    %c0_i32 = arith.constant 0 : i32
    %c0_i32_0 = arith.constant 0 : i32
    %c0_i32_1 = arith.constant 0 : i32
    return %c0_i32, %c0_i32_0 : i32, i32
  }
  func.func @transform_2(%arg0: i32) -> (i32, i32) {
    %c0_i32 = arith.constant 0 : i32
    %c0_i32_0 = arith.constant 0 : i32
    %c0_i32_1 = arith.constant 0 : i32
    return %c0_i32, %c0_i32_0 : i32, i32
  }
  func.func @transform_3(%arg0: i32) -> (i32, i32) {
    %c0_i32 = arith.constant 0 : i32
    %c0_i32_0 = arith.constant 0 : i32
    %c0_i32_1 = arith.constant 0 : i32
    return %c0_i32, %c0_i32_0 : i32, i32
  }
  func.func @transform_4(%arg0: i32) -> (i32, i32) {
    %c0_i32 = arith.constant 0 : i32
    %c0_i32_0 = arith.constant 0 : i32
    %c0_i32_1 = arith.constant 0 : i32
    return %c0_i32, %c0_i32_0 : i32, i32
  }
  func.func @transform_5(%arg0: i32) -> (i32, i32) {
    %c0_i32 = arith.constant 0 : i32
    %c0_i32_0 = arith.constant 0 : i32
    %c0_i32_1 = arith.constant 0 : i32
    return %c0_i32, %c0_i32_0 : i32, i32
  }
  func.func @transform_6(%arg0: i32) -> (i32, i32) {
    %c0_i32 = arith.constant 0 : i32
    %c0_i32_0 = arith.constant 0 : i32
    %c0_i32_1 = arith.constant 0 : i32
    return %c0_i32, %c0_i32_0 : i32, i32
  }
  func.func @transform_7(%arg0: i32) -> (i32, i32) {
    %c0_i32 = arith.constant 0 : i32
    %c0_i32_0 = arith.constant 0 : i32
    return %arg0, %c0_i32 : i32, i32
  }
}

</mosaic_0001>

<llo_original>
// kernel: diffusion_value_network.1
$region0: #{diffusion_value_network.1}
  #allocation0 [shape = 'u32[]', space=smem, size = 0x4, offset = 0x4, fixed_abs, tag = 'smem constant byte address 0x4 - core index']
  #allocation1 [shape = 'u32[144,128]{1,0:T(1,128)}', space=vmem, size = 0x12000, scoped, tag = 'internal scratch']
  #allocation2 [shape = 'f32[1,1]{1,0:T(1,128)S(1)}', space=vmem, size = 0x200, scoped, tag = 'scoped memory for diffusion_value_network.1']
  %s0 = inlined_call_operand.hbm [shape: f32[64,512], index: 0, kind: input, shape index: {}]
  %s1 = inlined_call_operand.hbm [shape: bf16[512,256], index: 1, kind: input, shape index: {}]
  %s2 = inlined_call_operand.vmem [shape: f32[1,256], index: 2, kind: input, shape index: {}]
  %s3 = inlined_call_operand.hbm [shape: bf16[256,128], index: 3, kind: input, shape index: {}]
  %s4 = inlined_call_operand.vmem [shape: f32[1,128], index: 4, kind: input, shape index: {}]
  %s5 = inlined_call_operand.vmem [shape: f32[1,128], index: 5, kind: input, shape index: {}]
  %s6 = inlined_call_operand.<no memory space> [shape: f32[1,1], index: 6, kind: input, shape index: {}]
  %s7 = inlined_call_operand.vmem [shape: f32[64,1], index: 7, kind: output, shape index: {}]
  %s8 = sld [smem:[#allocation0]]
  $region73: #{diffusion_value_network.1} parent=0
    _
  %s10 = ssub.s32 1, %s8
  %s11 = scalar_select 0, %s10, %s8
  %v12 = vstv %s6
  %13 = vst [vmem:[#allocation2] sm:$0x1] %v12
  $region1: #{diffusion_value_network.1} parent=0
    #allocation3 [shape = 'u8[131072]{0}', space=vmem, size = 0x20000, scoped, tag = 'input window, operand 0']
    #allocation4 [shape = 's32[2]{0}', space=sflag, size = 0x8, scoped, tag = 'scoped memory for diffusion_value_network.1']
    #allocation5 [shape = 'u8[262144]{0}', space=vmem, size = 0x40000, scoped, tag = 'input window, operand 1, single buffered']
    #allocation6 [shape = 's32[1]{0}', space=sflag, size = 0x4, scoped, tag = 'scoped memory for diffusion_value_network.1']
    #allocation7 [shape = 'u8[65536]{0}', space=vmem, size = 0x10000, scoped, tag = 'input window, operand 3, single buffered']
    %14 = vsyncpa [#allocation4], 0
    %s15 = scalar_lea.sflag [#allocation4], 1
    %16 = vsyncpa %s15, 0
    %17 = vsyncpa [#allocation6], 0
    loop: start=0, step=1, limit=4
    $region2: #{diffusion_value_network.1} parent=1 // loop_pre_header
      _
    $region3: #{diffusion_value_network.1} parent=1 // loop_header
      %s19 = sphi 0, %s23
      %p20 = scmp.ge.s32.totalorder %s19, 4
      %s29 = sphi 0, %s31
      %s32 = sphi 0, %s29
      %s33 = sphi 0, %s32
      %s49 = sphi 0, %s33
      %s53 = sphi 0, %s53
      %s55 = sphi 0, %s53
      %s56 = sphi 0, %s55
      %s70 = sphi 0, %s56
      %s74 = sphi 0, %s74
      %s76 = sphi 0, %s74
      %s77 = sphi 0, %s76
      %s91 = sphi 0, %s77
      %s95 = sphi 0, %s95
      %s97 = sphi 0, %s95
      %s98 = sphi 0, %s97
      %s112 = sphi 0, %s98
      %s116 = sphi 0, %s116
      %s118 = sphi 0, %s116
      %s119 = sphi 0, %s118
      %s133 = sphi 0, %s119
      %s137 = sphi 0, %s137
      %s139 = sphi 0, %s137
      %s140 = sphi 0, %s139
      %s154 = sphi 0, %s140
      %s158 = sphi 0, %s158
      %s160 = sphi 0, %s158
      %s161 = sphi 0, %s160
      %s175 = sphi 0, %s161
      %s181 = sphi 0, %s183
      %s184 = sphi 0, %s181
      %s185 = sphi 0, %s184
      %s201 = sphi 0, %s185
    $region4: #{diffusion_value_network.1} parent=1 // loop_header_branch
      %22 = sbr.rel (%p20) target = $region8
    $region5: #{diffusion_value_network.1} parent=1 // loop_body
      %s24 = ssub.s32 %s19, 1
      %s25 = ssub.s32 %s19, 2
      %s26 = sadd.s32 %s19, 1
      %s27 = ssub.s32 %s19, %s26
      %p28 = scmp.eq.s32.totalorder %s27, 0
      %s30 = sadd.s32 %s29, 1
      %s31 = scalar_select %p28, %s29, %s30
      %p34 = pneg %p28
      %p35 = scmp.eq.s32.totalorder %s19, 1
      %p36 = por %p34, %p35
      %p37 = scmp.ne.s32.totalorder %s29, %s32
      %p38 = scmp.eq.s32.totalorder %s19, 0
      %p39 = por %p37, %p38
      %p40 = scmp.ne.s32.totalorder %s29, %s32
      %p41 = scmp.eq.s32.totalorder %s24, 1
      %p42 = por %p40, %p41
      %p43 = scmp.ne.s32.totalorder %s32, %s33
      %p44 = scmp.eq.s32.totalorder %s24, 0
      %p45 = por %p43, %p44
      %p46 = scmp.ne.s32.totalorder %s32, %s33
      %p47 = scmp.eq.s32.totalorder %s25, 1
      %p48 = por %p46, %p47
      %p50 = scmp.ne.s32.totalorder %s33, %s49
      %p51 = scmp.eq.s32.totalorder %s25, 0
      %p52 = por %p50, %p51
      %s54 = sadd.s32 %s53, 1
      %p57 = scmp.eq.s32.totalorder %s19, 1
      %p58 = scmp.ne.s32.totalorder %s53, %s55
      %p59 = scmp.eq.s32.totalorder %s19, 0
      %p60 = por %p58, %p59
      %p61 = scmp.ne.s32.totalorder %s53, %s55
      %p62 = scmp.eq.s32.totalorder %s24, 1
      %p63 = por %p61, %p62
      %p64 = scmp.ne.s32.totalorder %s55, %s56
      %p65 = scmp.eq.s32.totalorder %s24, 0
      %p66 = por %p64, %p65
      %p67 = scmp.ne.s32.totalorder %s55, %s56
      %p68 = scmp.eq.s32.totalorder %s25, 1
      %p69 = por %p67, %p68
      %p71 = scmp.ne.s32.totalorder %s56, %s70
      %p72 = scmp.eq.s32.totalorder %s25, 0
      %p73 = por %p71, %p72
      %s75 = sadd.s32 %s74, 1
      %p78 = scmp.eq.s32.totalorder %s19, 1
      %p79 = scmp.ne.s32.totalorder %s74, %s76
      %p80 = scmp.eq.s32.totalorder %s19, 0
      %p81 = por %p79, %p80
      %p82 = scmp.ne.s32.totalorder %s74, %s76
      %p83 = scmp.eq.s32.totalorder %s24, 1
      %p84 = por %p82, %p83
      %p85 = scmp.ne.s32.totalorder %s76, %s77
      %p86 = scmp.eq.s32.totalorder %s24, 0
      %p87 = por %p85, %p86
      %p88 = scmp.ne.s32.totalorder %s76, %s77
      %p89 = scmp.eq.s32.totalorder %s25, 1
      %p90 = por %p88, %p89
      %p92 = scmp.ne.s32.totalorder %s77, %s91
      %p93 = scmp.eq.s32.totalorder %s25, 0
      %p94 = por %p92, %p93
      %s96 = sadd.s32 %s95, 1
      %p99 = scmp.eq.s32.totalorder %s19, 1
      %p100 = scmp.ne.s32.totalorder %s95, %s97
      %p101 = scmp.eq.s32.totalorder %s19, 0
      %p102 = por %p100, %p101
      %p103 = scmp.ne.s32.totalorder %s95, %s97
      %p104 = scmp.eq.s32.totalorder %s24, 1
      %p105 = por %p103, %p104
      %p106 = scmp.ne.s32.totalorder %s97, %s98
      %p107 = scmp.eq.s32.totalorder %s24, 0
      %p108 = por %p106, %p107
      %p109 = scmp.ne.s32.totalorder %s97, %s98
      %p110 = scmp.eq.s32.totalorder %s25, 1
      %p111 = por %p109, %p110
      %p113 = scmp.ne.s32.totalorder %s98, %s112
      %p114 = scmp.eq.s32.totalorder %s25, 0
      %p115 = por %p113, %p114
      %s117 = sadd.s32 %s116, 1
      %p120 = scmp.eq.s32.totalorder %s19, 1
      %p121 = scmp.ne.s32.totalorder %s116, %s118
      %p122 = scmp.eq.s32.totalorder %s19, 0
      %p123 = por %p121, %p122
      %p124 = scmp.ne.s32.totalorder %s116, %s118
      %p125 = scmp.eq.s32.totalorder %s24, 1
      %p126 = por %p124, %p125
      %p127 = scmp.ne.s32.totalorder %s118, %s119
      %p128 = scmp.eq.s32.totalorder %s24, 0
      %p129 = por %p127, %p128
      %p130 = scmp.ne.s32.totalorder %s118, %s119
      %p131 = scmp.eq.s32.totalorder %s25, 1
      %p132 = por %p130, %p131
      %p134 = scmp.ne.s32.totalorder %s119, %s133
      %p135 = scmp.eq.s32.totalorder %s25, 0
      %p136 = por %p134, %p135
      %s138 = sadd.s32 %s137, 1
      %p141 = scmp.eq.s32.totalorder %s19, 1
      %p142 = scmp.ne.s32.totalorder %s137, %s139
      %p143 = scmp.eq.s32.totalorder %s19, 0
      %p144 = por %p142, %p143
      %p145 = scmp.ne.s32.totalorder %s137, %s139
      %p146 = scmp.eq.s32.totalorder %s24, 1
      %p147 = por %p145, %p146
      %p148 = scmp.ne.s32.totalorder %s139, %s140
      %p149 = scmp.eq.s32.totalorder %s24, 0
      %p150 = por %p148, %p149
      %p151 = scmp.ne.s32.totalorder %s139, %s140
      %p152 = scmp.eq.s32.totalorder %s25, 1
      %p153 = por %p151, %p152
      %p155 = scmp.ne.s32.totalorder %s140, %s154
      %p156 = scmp.eq.s32.totalorder %s25, 0
      %p157 = por %p155, %p156
      %s159 = sadd.s32 %s158, 1
      %p162 = scmp.eq.s32.totalorder %s19, 1
      %p163 = scmp.ne.s32.totalorder %s158, %s160
      %p164 = scmp.eq.s32.totalorder %s19, 0
      %p165 = por %p163, %p164
      %p166 = scmp.ne.s32.totalorder %s158, %s160
      %p167 = scmp.eq.s32.totalorder %s24, 1
      %p168 = por %p166, %p167
      %p169 = scmp.ne.s32.totalorder %s160, %s161
      %p170 = scmp.eq.s32.totalorder %s24, 0
      %p171 = por %p169, %p170
      %p172 = scmp.ne.s32.totalorder %s160, %s161
      %p173 = scmp.eq.s32.totalorder %s25, 1
      %p174 = por %p172, %p173
      %p176 = scmp.ne.s32.totalorder %s161, %s175
      %p177 = scmp.eq.s32.totalorder %s25, 0
      %p178 = por %p176, %p177
      %s179 = ssub.s32 %s19, %s26
      %p180 = scmp.eq.s32.totalorder %s179, 0
      %s182 = sadd.s32 %s181, 1
      %s183 = scalar_select %p180, %s181, %s182
      %p186 = pneg %p180
      %p187 = scmp.eq.s32.totalorder %s19, 1
      %p188 = por %p186, %p187
      %p189 = scmp.ne.s32.totalorder %s181, %s184
      %p190 = scmp.eq.s32.totalorder %s19, 0
      %p191 = por %p189, %p190
      %p192 = scmp.ne.s32.totalorder %s181, %s184
      %p193 = scmp.eq.s32.totalorder %s24, 1
      %p194 = por %p192, %p193
      %p195 = scmp.ne.s32.totalorder %s184, %s185
      %p196 = scmp.eq.s32.totalorder %s24, 0
      %p197 = por %p195, %p196
      %p198 = scmp.ne.s32.totalorder %s184, %s185
      %p199 = scmp.eq.s32.totalorder %s25, 1
      %p200 = por %p198, %p199
      %p202 = scmp.ne.s32.totalorder %s185, %s201
      %p203 = scmp.eq.s32.totalorder %s25, 0
      %p204 = por %p202, %p203
      %p205 = scmp.le.s32.totalorder 1, %s19
      %p206 = scmp.lt.s32.totalorder %s19, 3
      %p207 = pnand %p205, %p206
      %p208 = pneg %p207
      // Predicated region
      $region9: #{diffusion_value_network.1} parent=5 // pred_check
        _
      $region10: #{diffusion_value_network.1} parent=5 // pred_check_branch
        %210 = sbr.rel (%p207) target = $region12
      $region11: #{diffusion_value_network.1} parent=5 // pred_region
        %s211 = ssub.s32 %s19, 1
        // Predicated region
        $region13: #{diffusion_value_network.1} parent=11 // pred_check
          %p212 = pneg %p66
        $region14: #{diffusion_value_network.1} parent=11 // pred_check_branch
          %214 = sbr.rel (%p212) target = $region16
        $region15: #{diffusion_value_network.1} parent=11 // pred_region
          %s216 = ssub.s32 8192, 8192
          %217 = vsyncadd [#allocation6], %s216
          %s218 = sshll.u32 [#allocation5], 4
          %s219 = int_to_ptr.vmem [resolvable:$true] %s218
          %224 = dma.hbm_to_vmem [thread:$0]  %s1, 8192, %s219, [#allocation6], 128, 128, 8
        $region16: #{diffusion_value_network.1} parent=11 // pred_fallthru
          _
        // Predicated region
        $region17: #{diffusion_value_network.1} parent=11 // pred_check
          %p225 = pneg %p87
        $region18: #{diffusion_value_network.1} parent=11 // pred_check_branch
          %227 = sbr.rel (%p225) target = $region20
        $region19: #{diffusion_value_network.1} parent=11 // pred_region
          _
        $region20: #{diffusion_value_network.1} parent=11 // pred_fallthru
          _
        // Predicated region
        $region21: #{diffusion_value_network.1} parent=11 // pred_check
          %p228 = pneg %p108
        $region22: #{diffusion_value_network.1} parent=11 // pred_check_branch
          %230 = sbr.rel (%p228) target = $region24
        $region23: #{diffusion_value_network.1} parent=11 // pred_region
          %s232 = ssub.s32 2048, 2048
          %233 = vsyncadd [#allocation6], %s232
          %s234 = sshll.u32 [#allocation7], 4
          %s235 = int_to_ptr.vmem [resolvable:$true] %s234
          %240 = dma.hbm_to_vmem [thread:$0]  %s3, 2048, %s235, [#allocation6], 64, 64, 4
        $region24: #{diffusion_value_network.1} parent=11 // pred_fallthru
          _
        // Predicated region
        $region25: #{diffusion_value_network.1} parent=11 // pred_check
          %p241 = pneg %p129
        $region26: #{diffusion_value_network.1} parent=11 // pred_check_branch
          %243 = sbr.rel (%p241) target = $region28
        $region27: #{diffusion_value_network.1} parent=11 // pred_region
          _
        $region28: #{diffusion_value_network.1} parent=11 // pred_fallthru
          _
        // Predicated region
        $region29: #{diffusion_value_network.1} parent=11 // pred_check
          %p244 = pneg %p150
        $region30: #{diffusion_value_network.1} parent=11 // pred_check_branch
          %246 = sbr.rel (%p244) target = $region32
        $region31: #{diffusion_value_network.1} parent=11 // pred_region
          _
        $region32: #{diffusion_value_network.1} parent=11 // pred_fallthru
          _
        // Predicated region
        $region33: #{diffusion_value_network.1} parent=11 // pred_check
          %p247 = pneg %p171
        $region34: #{diffusion_value_network.1} parent=11 // pred_check_branch
          %249 = sbr.rel (%p247) target = $region36
        $region35: #{diffusion_value_network.1} parent=11 // pred_region
          _
        $region36: #{diffusion_value_network.1} parent=11 // pred_fallthru
          _
      $region12: #{diffusion_value_network.1} parent=5 // pred_fallthru
        _
      %p250 = scmp.lt.s32.totalorder %s19, 2
      // Predicated region
      $region37: #{diffusion_value_network.1} parent=5 // pred_check
        %p251 = pneg %p250
      $region38: #{diffusion_value_network.1} parent=5 // pred_check_branch
        %253 = sbr.rel (%p251) target = $region40
      $region39: #{diffusion_value_network.1} parent=5 // pred_region
        // Predicated region
        $region41: #{diffusion_value_network.1} parent=39 // pred_check
          %p254 = pneg %p39
        $region42: #{diffusion_value_network.1} parent=39 // pred_check_branch
          %256 = sbr.rel (%p254) target = $region44
        $region43: #{diffusion_value_network.1} parent=39 // pred_region
          %s257 = sand.u32 %s29, 1
          %s258 = scalar_lea.sflag [#allocation4], %s257
          %s259 = sand.u32 %s29, 1
          %s260 = smul.addr %s259, 128
          %s261 = scalar_lea.vmem [#allocation3], %s260
          %s262 = smul.u32 4, %s19
          %s264 = ssub.s32 2048, 2048
          %265 = vsyncadd %s258, %s264
          %s266 = smul.addr %s262, 4
          %s267 = smul.addr %s266, 128
          %s268 = scalar_lea.hbm %s0, %s267
          %s269 = sshll.u32 %s261, 4
          %s270 = int_to_ptr.vmem [resolvable:$true] %s269
          %275 = dma.hbm_to_vmem [thread:$0]  %s268, 2048, %s270, %s258, 512, 512, 32
        $region44: #{diffusion_value_network.1} parent=39 // pred_fallthru
          _
      $region40: #{diffusion_value_network.1} parent=5 // pred_fallthru
        _
      %p276 = scmp.le.s32.totalorder 1, %s19
      %p277 = scmp.lt.s32.totalorder %s19, 3
      %p278 = pnand %p276, %p277
      %p279 = pneg %p278
      // Predicated region
      $region45: #{diffusion_value_network.1} parent=5 // pred_check
        _
      $region46: #{diffusion_value_network.1} parent=5 // pred_check_branch
        %281 = sbr.rel (%p278) target = $region48
      $region47: #{diffusion_value_network.1} parent=5 // pred_region
        %s282 = ssub.s32 %s19, 1
        %s283 = sand.u32 %s32, 1
        %s284 = scalar_lea.sflag [#allocation4], %s283
        %s285 = sand.u32 %s32, 1
        %s286 = smul.addr %s285, 128
        %s287 = scalar_lea.vmem [#allocation3], %s286
        // Predicated region
        $region49: #{diffusion_value_network.1} parent=47 // pred_check
          %p288 = pneg %p45
        $region50: #{diffusion_value_network.1} parent=47 // pred_check_branch
          %290 = sbr.rel (%p288) target = $region52
        $region51: #{diffusion_value_network.1} parent=47 // pred_region
          %291 = dma.done %s284, 2048
        $region52: #{diffusion_value_network.1} parent=47 // pred_fallthru
          _
        // Predicated region
        $region53: #{diffusion_value_network.1} parent=47 // pred_check
          %p292 = pneg %p66
        $region54: #{diffusion_value_network.1} parent=47 // pred_check_branch
          %294 = sbr.rel (%p292) target = $region56
        $region55: #{diffusion_value_network.1} parent=47 // pred_region
          %295 = dma.done [#allocation6], 8192
        $region56: #{diffusion_value_network.1} parent=47 // pred_fallthru
          _
        // Predicated region
        $region57: #{diffusion_value_network.1} parent=47 // pred_check
          %p296 = pneg %p108
        $region58: #{diffusion_value_network.1} parent=47 // pred_check_branch
          %298 = sbr.rel (%p296) target = $region60
        $region59: #{diffusion_value_network.1} parent=47 // pred_region
          %299 = dma.done [#allocation6], 2048
        $region60: #{diffusion_value_network.1} parent=47 // pred_fallthru
          _
        %s300 = sand.u32 %s32, 1
        %s301 = scalar_lea.sflag [#allocation4], %s300
        %s302 = sand.u32 %s32, 1
        %s303 = smul.addr %s302, 128
        %s304 = scalar_lea.vmem [#allocation3], %s303
        %p305 = pneg %p45
        %p306 = pneg %p42
        %p307 = pneg %p66
        %p308 = pneg %p63
        %p309 = pneg %p87
        %p310 = pneg %p84
        %p311 = pneg %p108
        %p312 = pneg %p105
        %p313 = pneg %p129
        %p314 = pneg %p126
        %p315 = pneg %p150
        %p316 = pneg %p147
        %p317 = pneg %p171
        %p318 = pneg %p168
        %p319 = pneg %p197
        %p320 = pneg %p194
        %s321 = smul.u32 4, %s24
        %p322 = scmp.lt.s32.totalorder %s321, 7
        %s323 = scalar_select %p322, %s321, 7
        %s324 = smul.addr %s323, 8
        %s325 = scalar_lea.vmem %s7, %s324
        %s326 = smul.u32 4, %s24
        %s327 = smul.u32 4, %s24
        %p328 = scmp.lt.s32.totalorder %s327, 7
        %s329 = scalar_select %p328, %s327, 7
        %s330 = smul.addr %s329, 8
        %s331 = scalar_lea.vmem %s7, %s330
        %s332 = smul.u32 4, %s24
        %v334 = vld [vmem:[%s287] sm:$0xff]
        %v335 = vld [vmem:[%s287 + $0x8] sm:$0xff]
        %v336 = vld [vmem:[%s287 + $0x10] sm:$0xff]
        %v337 = vld [vmem:[%s287 + $0x18] sm:$0xff]
        %v338 = vld [vmem:[%s287 + $0x20] sm:$0xff]
        %v339 = vld [vmem:[%s287 + $0x28] sm:$0xff]
        %v340 = vld [vmem:[%s287 + $0x30] sm:$0xff]
        %v341 = vld [vmem:[%s287 + $0x38] sm:$0xff]
        %v342 = vld [vmem:[%s287 + $0x40] sm:$0xff]
        %v343 = vld [vmem:[%s287 + $0x48] sm:$0xff]
        %v344 = vld [vmem:[%s287 + $0x50] sm:$0xff]
        %v345 = vld [vmem:[%s287 + $0x58] sm:$0xff]
        %v346 = vld [vmem:[%s287 + $0x60] sm:$0xff]
        %v347 = vld [vmem:[%s287 + $0x68] sm:$0xff]
        %v348 = vld [vmem:[%s287 + $0x70] sm:$0xff]
        %v349 = vld [vmem:[%s287 + $0x78] sm:$0xff]
        %v350 = vpack.c.bf16 %v338, %v334
        %v351 = vpack.c.bf16 %v339, %v335
        %v352 = vpack.c.bf16 %v340, %v336
        %v353 = vpack.c.bf16 %v341, %v337
        %v354 = vpack.c.bf16 %v346, %v342
        %v355 = vpack.c.bf16 %v347, %v343
        %v356 = vpack.c.bf16 %v348, %v344
        %v357 = vpack.c.bf16 %v349, %v345
        %v358 = vld [vmem:[#allocation5] sm:$0xff]
        %v359 = vld [vmem:[#allocation5 + $0x8] sm:$0xff]
        %v360 = vld [vmem:[#allocation5 + $0x10] sm:$0xff]
        %v361 = vld [vmem:[#allocation5 + $0x18] sm:$0xff]
        %v362 = vld [vmem:[#allocation5 + $0x20] sm:$0xff]
        %v363 = vld [vmem:[#allocation5 + $0x28] sm:$0xff]
        %v364 = vld [vmem:[#allocation5 + $0x30] sm:$0xff]
        %v365 = vld [vmem:[#allocation5 + $0x38] sm:$0xff]
        %v366 = vld [vmem:[#allocation5 + $0x40] sm:$0xff]
        %v367 = vld [vmem:[#allocation5 + $0x48] sm:$0xff]
        %v368 = vld [vmem:[#allocation5 + $0x50] sm:$0xff]
        %v369 = vld [vmem:[#allocation5 + $0x58] sm:$0xff]
        %v370 = vld [vmem:[#allocation5 + $0x60] sm:$0xff]
        %v371 = vld [vmem:[#allocation5 + $0x68] sm:$0xff]
        %v372 = vld [vmem:[#allocation5 + $0x70] sm:$0xff]
        %v373 = vld [vmem:[#allocation5 + $0x78] sm:$0xff]
        %v374 = vld [vmem:[#allocation5 + $0x80] sm:$0xff]
        %v375 = vld [vmem:[#allocation5 + $0x88] sm:$0xff]
        %v376 = vld [vmem:[#allocation5 + $0x90] sm:$0xff]
        %v377 = vld [vmem:[#allocation5 + $0x98] sm:$0xff]
        %v378 = vld [vmem:[#allocation5 + $0xa0] sm:$0xff]
        %v379 = vld [vmem:[#allocation5 + $0xa8] sm:$0xff]
        %v380 = vld [vmem:[#allocation5 + $0xb0] sm:$0xff]
        %v381 = vld [vmem:[#allocation5 + $0xb8] sm:$0xff]
        %v382 = vld [vmem:[#allocation5 + $0xc0] sm:$0xff]
        %v383 = vld [vmem:[#allocation5 + $0xc8] sm:$0xff]
        %v384 = vld [vmem:[#allocation5 + $0xd0] sm:$0xff]
        %v385 = vld [vmem:[#allocation5 + $0xd8] sm:$0xff]
        %v386 = vld [vmem:[#allocation5 + $0xe0] sm:$0xff]
        %v387 = vld [vmem:[#allocation5 + $0xe8] sm:$0xff]
        %v388 = vld [vmem:[#allocation5 + $0xf0] sm:$0xff]
        %v389 = vld [vmem:[#allocation5 + $0xf8] sm:$0xff]
        %v390 = vld [vmem:[#allocation5 + $0x100] sm:$0xff]
        %v391 = vld [vmem:[#allocation5 + $0x108] sm:$0xff]
        %v392 = vld [vmem:[#allocation5 + $0x110] sm:$0xff]
        %v393 = vld [vmem:[#allocation5 + $0x118] sm:$0xff]
        %v394 = vld [vmem:[#allocation5 + $0x120] sm:$0xff]
        %v395 = vld [vmem:[#allocation5 + $0x128] sm:$0xff]
        %v396 = vld [vmem:[#allocation5 + $0x130] sm:$0xff]
        %v397 = vld [vmem:[#allocation5 + $0x138] sm:$0xff]
        %v398 = vld [vmem:[#allocation5 + $0x140] sm:$0xff]
        %v399 = vld [vmem:[#allocation5 + $0x148] sm:$0xff]
        %v400 = vld [vmem:[#allocation5 + $0x150] sm:$0xff]
        %v401 = vld [vmem:[#allocation5 + $0x158] sm:$0xff]
        %v402 = vld [vmem:[#allocation5 + $0x160] sm:$0xff]
        %v403 = vld [vmem:[#allocation5 + $0x168] sm:$0xff]
        %v404 = vld [vmem:[#allocation5 + $0x170] sm:$0xff]
        %v405 = vld [vmem:[#allocation5 + $0x178] sm:$0xff]
        %v406 = vld [vmem:[#allocation5 + $0x180] sm:$0xff]
        %v407 = vld [vmem:[#allocation5 + $0x188] sm:$0xff]
        %v408 = vld [vmem:[#allocation5 + $0x190] sm:$0xff]
        %v409 = vld [vmem:[#allocation5 + $0x198] sm:$0xff]
        %v410 = vld [vmem:[#allocation5 + $0x1a0] sm:$0xff]
        %v411 = vld [vmem:[#allocation5 + $0x1a8] sm:$0xff]
        %v412 = vld [vmem:[#allocation5 + $0x1b0] sm:$0xff]
        %v413 = vld [vmem:[#allocation5 + $0x1b8] sm:$0xff]
        %v414 = vld [vmem:[#allocation5 + $0x1c0] sm:$0xff]
        %v415 = vld [vmem:[#allocation5 + $0x1c8] sm:$0xff]
        %v416 = vld [vmem:[#allocation5 + $0x1d0] sm:$0xff]
        %v417 = vld [vmem:[#allocation5 + $0x1d8] sm:$0xff]
        %v418 = vld [vmem:[#allocation5 + $0x1e0] sm:$0xff]
        %v419 = vld [vmem:[#allocation5 + $0x1e8] sm:$0xff]
        %v420 = vld [vmem:[#allocation5 + $0x1f0] sm:$0xff]
        %v421 = vld [vmem:[#allocation5 + $0x1f8] sm:$0xff]
        %v422 = vld [vmem:[%s2] sm:$0x3]
        %v424 = vlaneseq
        %v425 = vshrl.u32 %v424, 7
        %v426 = vsub.s32 0, %v425
        %v427 = vrot.slane %v422, %v426
        %v428 = vlaneseq
        %v429 = vshrl.u32 %v428, 7
        %v430 = vsub.s32 1, %v429
        %v431 = vrot.slane %v422, %v430
        %v498 = vunpack.c.l.b16 %v358
        %v499 = vunpack.c.h.b16 %v358
        %v500 = vunpack.c.l.b16 %v359
        %v501 = vunpack.c.h.b16 %v359
        %v502 = vunpack.c.l.b16 %v360
        %v503 = vunpack.c.h.b16 %v360
        %v504 = vunpack.c.l.b16 %v361
        %v505 = vunpack.c.h.b16 %v361
        %v506 = vunpack.c.l.b16 %v362
        %v507 = vunpack.c.h.b16 %v362
        %v508 = vunpack.c.l.b16 %v363
        %v509 = vunpack.c.h.b16 %v363
        %v510 = vunpack.c.l.b16 %v364
        %v511 = vunpack.c.h.b16 %v364
        %v512 = vunpack.c.l.b16 %v365
        %v513 = vunpack.c.h.b16 %v365
        %v514 = vunpack.c.l.b16 %v366
        %v515 = vunpack.c.h.b16 %v366
        %v516 = vunpack.c.l.b16 %v367
        %v517 = vunpack.c.h.b16 %v367
        %v518 = vunpack.c.l.b16 %v368
        %v519 = vunpack.c.h.b16 %v368
        %v520 = vunpack.c.l.b16 %v369
        %v521 = vunpack.c.h.b16 %v369
        %v522 = vunpack.c.l.b16 %v370
        %v523 = vunpack.c.h.b16 %v370
        %v524 = vunpack.c.l.b16 %v371
        %v525 = vunpack.c.h.b16 %v371
        %v526 = vunpack.c.l.b16 %v372
        %v527 = vunpack.c.h.b16 %v372
        %v528 = vunpack.c.l.b16 %v373
        %v529 = vunpack.c.h.b16 %v373
        %v530 = vunpack.c.l.b16 %v374
        %v531 = vunpack.c.h.b16 %v374
        %v532 = vunpack.c.l.b16 %v375
        %v533 = vunpack.c.h.b16 %v375
        %v534 = vunpack.c.l.b16 %v376
        %v535 = vunpack.c.h.b16 %v376
        %v536 = vunpack.c.l.b16 %v377
        %v537 = vunpack.c.h.b16 %v377
        %v538 = vunpack.c.l.b16 %v378
        %v539 = vunpack.c.h.b16 %v378
        %v540 = vunpack.c.l.b16 %v379
        %v541 = vunpack.c.h.b16 %v379
        %v542 = vunpack.c.l.b16 %v380
        %v543 = vunpack.c.h.b16 %v380
        %v544 = vunpack.c.l.b16 %v381
        %v545 = vunpack.c.h.b16 %v381
        %v546 = vunpack.c.l.b16 %v382
        %v547 = vunpack.c.h.b16 %v382
        %v548 = vunpack.c.l.b16 %v383
        %v549 = vunpack.c.h.b16 %v383
        %v550 = vunpack.c.l.b16 %v384
        %v551 = vunpack.c.h.b16 %v384
        %v552 = vunpack.c.l.b16 %v385
        %v553 = vunpack.c.h.b16 %v385
        %v554 = vunpack.c.l.b16 %v386
        %v555 = vunpack.c.h.b16 %v386
        %v556 = vunpack.c.l.b16 %v387
        %v557 = vunpack.c.h.b16 %v387
        %v558 = vunpack.c.l.b16 %v388
        %v559 = vunpack.c.h.b16 %v388
        %v560 = vunpack.c.l.b16 %v389
        %v561 = vunpack.c.h.b16 %v389
        %v562 = vunpack.c.l.b16 %v390
        %v563 = vunpack.c.h.b16 %v390
        %v564 = vunpack.c.l.b16 %v391
        %v565 = vunpack.c.h.b16 %v391
        %v566 = vunpack.c.l.b16 %v392
        %v567 = vunpack.c.h.b16 %v392
        %v568 = vunpack.c.l.b16 %v393
        %v569 = vunpack.c.h.b16 %v393
        %v570 = vunpack.c.l.b16 %v394
        %v571 = vunpack.c.h.b16 %v394
        %v572 = vunpack.c.l.b16 %v395
        %v573 = vunpack.c.h.b16 %v395
        %v574 = vunpack.c.l.b16 %v396
        %v575 = vunpack.c.h.b16 %v396
        %v576 = vunpack.c.l.b16 %v397
        %v577 = vunpack.c.h.b16 %v397
        %v578 = vunpack.c.l.b16 %v398
        %v579 = vunpack.c.h.b16 %v398
        %v580 = vunpack.c.l.b16 %v399
        %v581 = vunpack.c.h.b16 %v399
        %v582 = vunpack.c.l.b16 %v400
        %v583 = vunpack.c.h.b16 %v400
        %v584 = vunpack.c.l.b16 %v401
        %v585 = vunpack.c.h.b16 %v401
        %v586 = vunpack.c.l.b16 %v402
        %v587 = vunpack.c.h.b16 %v402
        %v588 = vunpack.c.l.b16 %v403
        %v589 = vunpack.c.h.b16 %v403
        %v590 = vunpack.c.l.b16 %v404
        %v591 = vunpack.c.h.b16 %v404
        %v592 = vunpack.c.l.b16 %v405
        %v593 = vunpack.c.h.b16 %v405
        %v594 = vunpack.c.l.b16 %v406
        %v595 = vunpack.c.h.b16 %v406
        %v596 = vunpack.c.l.b16 %v407
        %v597 = vunpack.c.h.b16 %v407
        %v598 = vunpack.c.l.b16 %v408
        %v599 = vunpack.c.h.b16 %v408
        %v600 = vunpack.c.l.b16 %v409
        %v601 = vunpack.c.h.b16 %v409
        %v602 = vunpack.c.l.b16 %v410
        %v603 = vunpack.c.h.b16 %v410
        %v604 = vunpack.c.l.b16 %v411
        %v605 = vunpack.c.h.b16 %v411
        %v606 = vunpack.c.l.b16 %v412
        %v607 = vunpack.c.h.b16 %v412
        %v608 = vunpack.c.l.b16 %v413
        %v609 = vunpack.c.h.b16 %v413
        %v610 = vunpack.c.l.b16 %v414
        %v611 = vunpack.c.h.b16 %v414
        %v612 = vunpack.c.l.b16 %v415
        %v613 = vunpack.c.h.b16 %v415
        %v614 = vunpack.c.l.b16 %v416
        %v615 = vunpack.c.h.b16 %v416
        %v616 = vunpack.c.l.b16 %v417
        %v617 = vunpack.c.h.b16 %v417
        %v618 = vunpack.c.l.b16 %v418
        %v619 = vunpack.c.h.b16 %v418
        %v620 = vunpack.c.l.b16 %v419
        %v621 = vunpack.c.h.b16 %v419
        %v622 = vunpack.c.l.b16 %v420
        %v623 = vunpack.c.h.b16 %v420
        %v624 = vunpack.c.l.b16 %v421
        %v625 = vunpack.c.h.b16 %v421
        %v626 = vpack.c.b16 %v500, %v498
        %v627 = vpack.c.b16 %v501, %v499
        %v628 = vpack.c.b16 %v504, %v502
        %v629 = vpack.c.b16 %v505, %v503
        %v630 = vpack.c.b16 %v508, %v506
        %v631 = vpack.c.b16 %v509, %v507
        %v632 = vpack.c.b16 %v512, %v510
        %v633 = vpack.c.b16 %v513, %v511
        %v634 = vpack.c.b16 %v516, %v514
        %v635 = vpack.c.b16 %v517, %v515
        %v636 = vpack.c.b16 %v520, %v518
        %v637 = vpack.c.b16 %v521, %v519
        %v638 = vpack.c.b16 %v524, %v522
        %v639 = vpack.c.b16 %v525, %v523
        %v640 = vpack.c.b16 %v528, %v526
        %v641 = vpack.c.b16 %v529, %v527
        %v642 = vpack.c.b16 %v532, %v530
        %v643 = vpack.c.b16 %v533, %v531
        %v644 = vpack.c.b16 %v536, %v534
        %v645 = vpack.c.b16 %v537, %v535
        %v646 = vpack.c.b16 %v540, %v538
        %v647 = vpack.c.b16 %v541, %v539
        %v648 = vpack.c.b16 %v544, %v542
        %v649 = vpack.c.b16 %v545, %v543
        %v650 = vpack.c.b16 %v548, %v546
        %v651 = vpack.c.b16 %v549, %v547
        %v652 = vpack.c.b16 %v552, %v550
        %v653 = vpack.c.b16 %v553, %v551
        %v654 = vpack.c.b16 %v556, %v554
        %v655 = vpack.c.b16 %v557, %v555
        %v656 = vpack.c.b16 %v560, %v558
        %v657 = vpack.c.b16 %v561, %v559
        %v658 = vpack.c.b16 %v564, %v562
        %v659 = vpack.c.b16 %v565, %v563
        %v660 = vpack.c.b16 %v568, %v566
        %v661 = vpack.c.b16 %v569, %v567
        %v662 = vpack.c.b16 %v572, %v570
        %v663 = vpack.c.b16 %v573, %v571
        %v664 = vpack.c.b16 %v576, %v574
        %v665 = vpack.c.b16 %v577, %v575
        %v666 = vpack.c.b16 %v580, %v578
        %v667 = vpack.c.b16 %v581, %v579
        %v668 = vpack.c.b16 %v584, %v582
        %v669 = vpack.c.b16 %v585, %v583
        %v670 = vpack.c.b16 %v588, %v586
        %v671 = vpack.c.b16 %v589, %v587
        %v672 = vpack.c.b16 %v592, %v590
        %v673 = vpack.c.b16 %v593, %v591
        %v674 = vpack.c.b16 %v596, %v594
        %v675 = vpack.c.b16 %v597, %v595
        %v676 = vpack.c.b16 %v600, %v598
        %v677 = vpack.c.b16 %v601, %v599
        %v678 = vpack.c.b16 %v604, %v602
        %v679 = vpack.c.b16 %v605, %v603
        %v680 = vpack.c.b16 %v608, %v606
        %v681 = vpack.c.b16 %v609, %v607
        %v682 = vpack.c.b16 %v612, %v610
        %v683 = vpack.c.b16 %v613, %v611
        %v684 = vpack.c.b16 %v616, %v614
        %v685 = vpack.c.b16 %v617, %v615
        %v686 = vpack.c.b16 %v620, %v618
        %v687 = vpack.c.b16 %v621, %v619
        %v688 = vpack.c.b16 %v624, %v622
        %v689 = vpack.c.b16 %v625, %v623
        %754 = vmatprep.subr.bf16.mxu0 %v641
        %755 = vmatpush1.bf16.msra.mxu0 %v640
        %756 = vmatprep.subr.bf16.mxu0 %v639
        %757 = vmatpush1.bf16.msra.mxu0 %v638
        %758 = vmatprep.subr.bf16.mxu0 %v637
        %759 = vmatpush1.bf16.msra.mxu0 %v636
        %760 = vmatprep.subr.bf16.mxu0 %v635
        %761 = vmatpush1.bf16.msra.mxu0 %v634
        %762 = vmatprep.subr.bf16.mxu0 %v633
        %763 = vmatpush1.bf16.msra.mxu0 %v632
        %764 = vmatprep.subr.bf16.mxu0 %v631
        %765 = vmatpush1.bf16.msra.mxu0 %v630
        %766 = vmatprep.subr.bf16.mxu0 %v629
        %767 = vmatpush1.bf16.msra.mxu0 %v628
        %768 = vmatprep.subr.bf16.mxu0 %v627
        %769 = vmatpush1.bf16.msra.mxu0 %v626
        %770 = vmatprep.subr.bf16.mxu0 %v657
        %771 = vmatpush2.bf16.msra.mxu0 %v656
        %772 = vmatprep.subr.bf16.mxu0 %v655
        %773 = vmatpush2.bf16.msra.mxu0 %v654
        %774 = vmatprep.subr.bf16.mxu0 %v653
        %775 = vmatpush2.bf16.msra.mxu0 %v652
        %776 = vmatprep.subr.bf16.mxu0 %v651
        %777 = vmatpush2.bf16.msra.mxu0 %v650
        %778 = vmatprep.subr.bf16.mxu0 %v649
        %779 = vmatpush2.bf16.msra.mxu0 %v648
        %780 = vmatprep.subr.bf16.mxu0 %v647
        %781 = vmatpush2.bf16.msra.mxu0 %v646
        %782 = vmatprep.subr.bf16.mxu0 %v645
        %783 = vmatpush2.bf16.msra.mxu0 %v644
        %784 = vmatprep.subr.bf16.mxu0 %v643
        %785 = vmatpush2.bf16.msra.mxu0 %v642
        %786 = vmatprep.mubr.bf16.mxu0 %v351
        %787 = vmatmul.mubr.bf16.gmra.mxu0 %v350
        %v788 = vpop.f32.mrf.mxu0
        %v789 = vadd.f32 %v427, %v788
        %v790 = vpop.f32.mrf.mxu0
        %v791 = vadd.f32 %v431, %v790
        %v792 = vpop.f32.mrf.mxu0
        %v793 = vadd.f32 %v427, %v792
        %v794 = vpop.f32.mrf.mxu0
        %v795 = vadd.f32 %v431, %v794
        %796 = vmatprep.mubr.bf16.mxu0 %v355
        %797 = vmatmul.mubr.bf16.gmra.mxu0 %v354
        %v798 = vpop.f32.mrf.mxu0
        %v799 = vadd.f32 %v427, %v798
        %v800 = vpop.f32.mrf.mxu0
        %v801 = vadd.f32 %v431, %v800
        %v802 = vpop.f32.mrf.mxu0
        %v803 = vadd.f32 %v427, %v802
        %v804 = vpop.f32.mrf.mxu0
        %v805 = vadd.f32 %v431, %v804
        %806 = vdwg.mxu0
        %807 = vmatprep.subr.bf16.mxu0 %v673
        %808 = vmatpush1.bf16.msra.mxu0 %v672
        %809 = vmatprep.subr.bf16.mxu0 %v671
        %810 = vmatpush1.bf16.msra.mxu0 %v670
        %811 = vmatprep.subr.bf16.mxu0 %v669
        %812 = vmatpush1.bf16.msra.mxu0 %v668
        %813 = vmatprep.subr.bf16.mxu0 %v667
        %814 = vmatpush1.bf16.msra.mxu0 %v666
        %815 = vmatprep.subr.bf16.mxu0 %v665
        %816 = vmatpush1.bf16.msra.mxu0 %v664
        %817 = vmatprep.subr.bf16.mxu0 %v663
        %818 = vmatpush1.bf16.msra.mxu0 %v662
        %819 = vmatprep.subr.bf16.mxu0 %v661
        %820 = vmatpush1.bf16.msra.mxu0 %v660
        %821 = vmatprep.subr.bf16.mxu0 %v659
        %822 = vmatpush1.bf16.msra.mxu0 %v658
        %823 = vmatprep.subr.bf16.mxu0 %v689
        %824 = vmatpush2.bf16.msra.mxu0 %v688
        %825 = vmatprep.subr.bf16.mxu0 %v687
        %826 = vmatpush2.bf16.msra.mxu0 %v686
        %827 = vmatprep.subr.bf16.mxu0 %v685
        %828 = vmatpush2.bf16.msra.mxu0 %v684
        %829 = vmatprep.subr.bf16.mxu0 %v683
        %830 = vmatpush2.bf16.msra.mxu0 %v682
        %831 = vmatprep.subr.bf16.mxu0 %v681
        %832 = vmatpush2.bf16.msra.mxu0 %v680
        %833 = vmatprep.subr.bf16.mxu0 %v679
        %834 = vmatpush2.bf16.msra.mxu0 %v678
        %835 = vmatprep.subr.bf16.mxu0 %v677
        %836 = vmatpush2.bf16.msra.mxu0 %v676
        %837 = vmatprep.subr.bf16.mxu0 %v675
        %838 = vmatpush2.bf16.msra.mxu0 %v674
        %839 = vmatprep.mubr.bf16.mxu0 %v353
        %840 = vmatmul.mubr.bf16.gmra.mxu0 %v352
        %v841 = vpop.f32.mrf.mxu0
        %v842 = vadd.f32 %v789, %v841
        %v843 = vpop.f32.mrf.mxu0
        %v844 = vadd.f32 %v791, %v843
        %v845 = vpop.f32.mrf.mxu0
        %v846 = vadd.f32 %v793, %v845
        %v847 = vpop.f32.mrf.mxu0
        %v848 = vadd.f32 %v795, %v847
        %849 = vmatprep.mubr.bf16.mxu0 %v357
        %850 = vmatmul.mubr.bf16.gmra.mxu0 %v356
        %v851 = vpop.f32.mrf.mxu0
        %v852 = vadd.f32 %v799, %v851
        %v853 = vpop.f32.mrf.mxu0
        %v854 = vadd.f32 %v801, %v853
        %v855 = vpop.f32.mrf.mxu0
        %v856 = vadd.f32 %v803, %v855
        %v857 = vpop.f32.mrf.mxu0
        %v858 = vadd.f32 %v805, %v857
        %859 = vdwg.mxu0
        %v860 = vmax.f32 %v842, 0.0
        %v861 = vmax.f32 %v844, 0.0
        %v862 = vmax.f32 %v846, 0.0
        %v863 = vmax.f32 %v848, 0.0
        %v864 = vmax.f32 %v852, 0.0
        %v865 = vmax.f32 %v854, 0.0
        %v866 = vmax.f32 %v856, 0.0
        %v867 = vmax.f32 %v858, 0.0
        %v868 = vpack.c.bf16 %v862, %v860
        %v869 = vpack.c.bf16 %v863, %v861
        %v870 = vpack.c.bf16 %v866, %v864
        %v871 = vpack.c.bf16 %v867, %v865
        %v872 = vld [vmem:[#allocation7] sm:$0xf]
        %v873 = vld [vmem:[#allocation7 + $0x4] sm:$0xf]
        %v874 = vld [vmem:[#allocation7 + $0x8] sm:$0xf]
        %v875 = vld [vmem:[#allocation7 + $0xc] sm:$0xf]
        %v876 = vld [vmem:[#allocation7 + $0x10] sm:$0xf]
        %v877 = vld [vmem:[#allocation7 + $0x14] sm:$0xf]
        %v878 = vld [vmem:[#allocation7 + $0x18] sm:$0xf]
        %v879 = vld [vmem:[#allocation7 + $0x1c] sm:$0xf]
        %v880 = vld [vmem:[#allocation7 + $0x20] sm:$0xf]
        %v881 = vld [vmem:[#allocation7 + $0x24] sm:$0xf]
        %v882 = vld [vmem:[#allocation7 + $0x28] sm:$0xf]
        %v883 = vld [vmem:[#allocation7 + $0x2c] sm:$0xf]
        %v884 = vld [vmem:[#allocation7 + $0x30] sm:$0xf]
        %v885 = vld [vmem:[#allocation7 + $0x34] sm:$0xf]
        %v886 = vld [vmem:[#allocation7 + $0x38] sm:$0xf]
        %v887 = vld [vmem:[#allocation7 + $0x3c] sm:$0xf]
        %v888 = vld [vmem:[#allocation7 + $0x40] sm:$0xf]
        %v889 = vld [vmem:[#allocation7 + $0x44] sm:$0xf]
        %v890 = vld [vmem:[#allocation7 + $0x48] sm:$0xf]
        %v891 = vld [vmem:[#allocation7 + $0x4c] sm:$0xf]
        %v892 = vld [vmem:[#allocation7 + $0x50] sm:$0xf]
        %v893 = vld [vmem:[#allocation7 + $0x54] sm:$0xf]
        %v894 = vld [vmem:[#allocation7 + $0x58] sm:$0xf]
        %v895 = vld [vmem:[#allocation7 + $0x5c] sm:$0xf]
        %v896 = vld [vmem:[#allocation7 + $0x60] sm:$0xf]
        %v897 = vld [vmem:[#allocation7 + $0x64] sm:$0xf]
        %v898 = vld [vmem:[#allocation7 + $0x68] sm:$0xf]
        %v899 = vld [vmem:[#allocation7 + $0x6c] sm:$0xf]
        %v900 = vld [vmem:[#allocation7 + $0x70] sm:$0xf]
        %v901 = vld [vmem:[#allocation7 + $0x74] sm:$0xf]
        %v902 = vld [vmem:[#allocation7 + $0x78] sm:$0xf]
        %v903 = vld [vmem:[#allocation7 + $0x7c] sm:$0xf]
        %v904 = vld [vmem:[%s4] sm:$0x1]
        %v906 = vlaneseq
        %v907 = vshrl.u32 %v906, 7
        %v908 = vsub.s32 0, %v907
        %v909 = vrot.slane %v904, %v908
        %v943 = vunpack.c.l.b16 %v872
        %v944 = vunpack.c.l.b16 %v873
        %v945 = vunpack.c.l.b16 %v874
        %v946 = vunpack.c.l.b16 %v875
        %v947 = vunpack.c.l.b16 %v876
        %v948 = vunpack.c.l.b16 %v877
        %v949 = vunpack.c.l.b16 %v878
        %v950 = vunpack.c.l.b16 %v879
        %v951 = vunpack.c.l.b16 %v880
        %v952 = vunpack.c.l.b16 %v881
        %v953 = vunpack.c.l.b16 %v882
        %v954 = vunpack.c.l.b16 %v883
        %v955 = vunpack.c.l.b16 %v884
        %v956 = vunpack.c.l.b16 %v885
        %v957 = vunpack.c.l.b16 %v886
        %v958 = vunpack.c.l.b16 %v887
        %v959 = vunpack.c.l.b16 %v888
        %v960 = vunpack.c.l.b16 %v889
        %v961 = vunpack.c.l.b16 %v890
        %v962 = vunpack.c.l.b16 %v891
        %v963 = vunpack.c.l.b16 %v892
        %v964 = vunpack.c.l.b16 %v893
        %v965 = vunpack.c.l.b16 %v894
        %v966 = vunpack.c.l.b16 %v895
        %v967 = vunpack.c.l.b16 %v896
        %v968 = vunpack.c.l.b16 %v897
        %v969 = vunpack.c.l.b16 %v898
        %v970 = vunpack.c.l.b16 %v899
        %v971 = vunpack.c.l.b16 %v900
        %v972 = vunpack.c.l.b16 %v901
        %v973 = vunpack.c.l.b16 %v902
        %v974 = vunpack.c.l.b16 %v903
        %v975 = vpack.c.b16 %v944, %v943
        %v976 = vpack.c.b16 %v946, %v945
        %v977 = vpack.c.b16 %v948, %v947
        %v978 = vpack.c.b16 %v950, %v949
        %v979 = vpack.c.b16 %v952, %v951
        %v980 = vpack.c.b16 %v954, %v953
        %v981 = vpack.c.b16 %v956, %v955
        %v982 = vpack.c.b16 %v958, %v957
        %v983 = vpack.c.b16 %v960, %v959
        %v984 = vpack.c.b16 %v962, %v961
        %v985 = vpack.c.b16 %v964, %v963
        %v986 = vpack.c.b16 %v966, %v965
        %v987 = vpack.c.b16 %v968, %v967
        %v988 = vpack.c.b16 %v970, %v969
        %v989 = vpack.c.b16 %v972, %v971
        %v990 = vpack.c.b16 %v974, %v973
        %1007 = vmatprep.subr.bf16.mxu0 0
        %1008 = vmatpush1.bf16.msra.mxu0 %v982
        %1009 = vmatprep.subr.bf16.mxu0 0
        %1010 = vmatpush1.bf16.msra.mxu0 %v981
        %1011 = vmatprep.subr.bf16.mxu0 0
        %1012 = vmatpush1.bf16.msra.mxu0 %v980
        %1013 = vmatprep.subr.bf16.mxu0 0
        %1014 = vmatpush1.bf16.msra.mxu0 %v979
        %1015 = vmatprep.subr.bf16.mxu0 0
        %1016 = vmatpush1.bf16.msra.mxu0 %v978
        %1017 = vmatprep.subr.bf16.mxu0 0
        %1018 = vmatpush1.bf16.msra.mxu0 %v977
        %1019 = vmatprep.subr.bf16.mxu0 0
        %1020 = vmatpush1.bf16.msra.mxu0 %v976
        %1021 = vmatprep.subr.bf16.mxu0 0
        %1022 = vmatpush1.bf16.msra.mxu0 %v975
        %1023 = vmatprep.subr.bf16.mxu0 0
        %1024 = vmatpush2.bf16.msra.mxu0 %v990
        %1025 = vmatprep.subr.bf16.mxu0 0
        %1026 = vmatpush2.bf16.msra.mxu0 %v989
        %1027 = vmatprep.subr.bf16.mxu0 0
        %1028 = vmatpush2.bf16.msra.mxu0 %v988
        %1029 = vmatprep.subr.bf16.mxu0 0
        %1030 = vmatpush2.bf16.msra.mxu0 %v987
        %1031 = vmatprep.subr.bf16.mxu0 0
        %1032 = vmatpush2.bf16.msra.mxu0 %v986
        %1033 = vmatprep.subr.bf16.mxu0 0
        %1034 = vmatpush2.bf16.msra.mxu0 %v985
        %1035 = vmatprep.subr.bf16.mxu0 0
        %1036 = vmatpush2.bf16.msra.mxu0 %v984
        %1037 = vmatprep.subr.bf16.mxu0 0
        %1038 = vmatpush2.bf16.msra.mxu0 %v983
        %1039 = vmatprep.mubr.bf16.mxu0 %v869
        %1040 = vmatmul.mubr.bf16.gmra.mxu0 %v868
        %v1041 = vpop.f32.mrf.mxu0
        %v1042 = vadd.f32 %v909, %v1041
        %v1043 = vpop.f32.mrf.mxu0
        %v1044 = vpop.f32.mrf.mxu0
        %v1045 = vadd.f32 %v909, %v1044
        %v1046 = vpop.f32.mrf.mxu0
        %1047 = vmatprep.mubr.bf16.mxu0 %v871
        %1048 = vmatmul.mubr.bf16.gmra.mxu0 %v870
        %v1049 = vpop.f32.mrf.mxu0
        %v1050 = vadd.f32 %v909, %v1049
        %v1051 = vpop.f32.mrf.mxu0
        %v1052 = vpop.f32.mrf.mxu0
        %v1053 = vadd.f32 %v909, %v1052
        %v1054 = vpop.f32.mrf.mxu0
        %1055 = vdwg.mxu0
        %v1056 = vmax.f32 %v1042, 0.0
        %v1057 = vmax.f32 %v1045, 0.0
        %v1058 = vmax.f32 %v1050, 0.0
        %v1059 = vmax.f32 %v1053, 0.0
        %v1060 = vld [vmem:[%s5] sm:$0x1]
        %v1062 = vlaneseq
        %v1063 = vshrl.u32 %v1062, 7
        %v1064 = vsub.s32 0, %v1063
        %v1065 = vrot.slane %v1060, %v1064
        %v1067 = vmul.f32 %v1056, %v1065
        %v1068 = vmul.f32 %v1057, %v1065
        %v1069 = vmul.f32 %v1058, %v1065
        %v1070 = vmul.f32 %v1059, %v1065
        %1071 = vadd.xlane.f32.xlu0 %v1067
        %v1072 = vpop.xlane.xlu0 %1071
        %1073 = vadd.xlane.f32.xlu0 %v1068
        %v1074 = vpop.xlane.xlu0 %1073
        %1075 = vadd.xlane.f32.xlu0 %v1069
        %v1076 = vpop.xlane.xlu0 %1075
        %1077 = vadd.xlane.f32.xlu0 %v1070
        %v1078 = vpop.xlane.xlu0 %1077
        %v1079 = vld [vmem:[#allocation2] sm:$0x1]
        %v1081 = vlaneseq
        %v1082 = vshrl.u32 %v1081, 7
        %v1083 = vsub.s32 0, %v1082
        %v1084 = vrot.slane %v1079, %v1083
        %v1086 = vadd.f32 %v1072, %v1084
        %v1087 = vadd.f32 %v1074, %v1084
        %v1088 = vadd.f32 %v1076, %v1084
        %v1089 = vadd.f32 %v1078, %v1084
        %vm1090 = vcmask 7168
        %1091 = vst.msk [vmem:[%s331] sm:$0xff] %vm1090, %v1086
        %1092 = vst.msk [vmem:[%s331 + $0x8] sm:$0xff] %vm1090, %v1087
        %1093 = vst.msk [vmem:[%s331 + $0x10] sm:$0xff] %vm1090, %v1088
        %1094 = vst.msk [vmem:[%s331 + $0x18] sm:$0xff] %vm1090, %v1089
        %s1095 = smul.u32 4, %s24
        %p1096 = scmp.lt.s32.totalorder %s1095, 7
        %s1097 = scalar_select %p1096, %s1095, 7
        %s1098 = smul.addr %s1097, 8
        %s1099 = scalar_lea.vmem %s7, %s1098
        // Predicated region
        $region61: #{diffusion_value_network.1} parent=47 // pred_check
          %p1100 = pneg %p194
        $region62: #{diffusion_value_network.1} parent=47 // pred_check_branch
          %1102 = sbr.rel (%p1100) target = $region64
        $region63: #{diffusion_value_network.1} parent=47 // pred_region
          %s1103 = smul.u32 4, %s24
        $region64: #{diffusion_value_network.1} parent=47 // pred_fallthru
          _
      $region48: #{diffusion_value_network.1} parent=5 // pred_fallthru
        _
      %p1104 = scmp.le.s32.totalorder 2, %s19
      // Predicated region
      $region65: #{diffusion_value_network.1} parent=5 // pred_check
        %p1105 = pneg %p1104
      $region66: #{diffusion_value_network.1} parent=5 // pred_check_branch
        %1107 = sbr.rel (%p1105) target = $region68
      $region67: #{diffusion_value_network.1} parent=5 // pred_region
        %s1108 = ssub.s32 %s19, 2
        // Predicated region
        $region69: #{diffusion_value_network.1} parent=67 // pred_check
          %p1109 = pneg %p200
        $region70: #{diffusion_value_network.1} parent=67 // pred_check_branch
          %1111 = sbr.rel (%p1109) target = $region72
        $region71: #{diffusion_value_network.1} parent=67 // pred_region
          %s1112 = smul.u32 4, %s25
          %p1113 = scmp.lt.s32.totalorder %s1112, 7
          %s1114 = scalar_select %p1113, %s1112, 7
          %s1115 = smul.addr %s1114, 8
          %s1116 = scalar_lea.vmem %s7, %s1115
        $region72: #{diffusion_value_network.1} parent=67 // pred_fallthru
          _
      $region68: #{diffusion_value_network.1} parent=5 // pred_fallthru
        _
    $region6: #{diffusion_value_network.1} parent=1 // loop_footer
      %s23 = sadd.s32 1, %s19
    $region7: #{diffusion_value_network.1} parent=1 // loop_footer_branch
      %18 = sbr.rel target = $region3
    $region8: #{diffusion_value_network.1} parent=1 // loop_exit
      _
    %1117 = vsyncpa [#allocation4], 1
    %s1118 = scalar_lea.sflag [#allocation4], 1
    %1119 = vsyncpa %s1118, 1
    %1120 = vsyncpa [#allocation6], 1

</llo_original>
